<compile_context>
chip_gen: v7x
topology: tpu7x:2x2x1
jax: 0.10.0
libtpu: 0.0.40
codegen_flags: <defaults>
</compile_context>

<pallas_src>
import functools

import jax
import jax.numpy as jnp
from jax import lax
from jax.experimental import pallas as pl
from jax.experimental.pallas import tpu as pltpu

_MAX_B_TILE = 2048          # rows; bounds lane-padded (bt,1) per-row vector waste
_SINGLE_CHUNK_MAX_C = 1024  # whole-C-per-pass up to this many classes
_C_CHUNK = 512              # class-chunk width (multiple of 128) for large C
_F32_TEMP_FACTOR = 6        # est. live f32 temporaries per chunk element
_ROW_OVERHEAD_BYTES = 8192  # lane-padded (bt,1) accumulators / row temporaries


def _round_up(x, m):
    return (x + m - 1) // m * m


def _vmem_limit_bytes():
    """Generation-aware scoped-VMEM request (v5e/v6e: 128 MiB phys, v7x: 64 MiB)."""
    phys = 64 * 1024 * 1024  # conservative default (v7x)
    try:
        info = pltpu.get_tpu_info()
        cap = getattr(info, "vmem_capacity_bytes", None)
        if cap:
            phys = int(cap)
    except Exception:
        pass
    return 80 * 1024 * 1024 if phys >= 128 * 1024 * 1024 else 40 * 1024 * 1024


def _plan_tiles(b, c, itemsize):
    """Pick (b_tile, class-chunk plan, vmem limit) from static shapes."""
    if c <= _SINGLE_CHUNK_MAX_C:
        c_chunk, n_full, c_tail = c, 1, 0
    else:
        c_chunk = _C_CHUNK
        n_full, c_tail = c // c_chunk, c % c_chunk
    vmem_limit = _vmem_limit_bytes()
    budget = vmem_limit - 8 * 1024 * 1024  # headroom for outputs/compiler scratch
    # Per-row working set: double-buffered native logits + f32 chunk temporaries
    # + lane-padded per-row accumulators/temporaries.
    per_row = 2 * c * itemsize + _F32_TEMP_FACTOR * 4 * c_chunk + _ROW_OVERHEAD_BYTES
    b_tile = max(8, (budget // per_row) // 8 * 8)
    b_tile = min(b_tile, _MAX_B_TILE, _round_up(b, 8))
    # v7x megacore: prefer >= ~4 grid steps so both TensorCores get work.
    b_tile = min(b_tile, max(8, _round_up(pl.cdiv(b, 4), 8)))
    return int(b_tile), c_chunk, n_full, c_tail, vmem_limit


def _chunk_stats(chunk, col0, tgt, fused_max):
    """Per-row stats for one class chunk.

    chunk: (bt, csz) native dtype; col0: global class offset of lane 0;
    tgt:   (bt, 1) int32 targets.
    Returns f32 (bt,1) arrays: (target_sum, other_max, chunk_max, sum_exp_norm).
    """
    col = lax.broadcasted_iota(jnp.int32, chunk.shape, 1) + col0
    onehot = col == tgt
    zero = jnp.zeros((), chunk.dtype)
    neg_inf = jnp.array(-jnp.inf, dtype=chunk.dtype)
    # One-hot select/max in the native dtype (fewer f32 VALU passes on v6e/v7x).
    t_sum = jnp.sum(jnp.where(onehot, chunk, zero), axis=1,
                    keepdims=True).astype(jnp.float32)
    o_max = jnp.max(jnp.where(onehot, neg_inf, chunk), axis=1,
                    keepdims=True).astype(jnp.float32)
    if fused_max:
        # Target guaranteed inside this chunk -> true row max without extra pass.
        c_max = jnp.maximum(o_max, t_sum)
    else:
        c_max = jnp.max(chunk, axis=1, keepdims=True).astype(jnp.float32)
    s_exp = jnp.sum(jnp.exp(chunk.astype(jnp.float32) - c_max),
                    axis=1, keepdims=True)
    return t_sum, o_max, c_max, s_exp


def _pmd_loss_kernel(margin_ref, logits_ref, targets_ref, out_ref, *,
                     batch_size, c_chunk, n_full, c_tail):
    """One batch tile of CE-sum + margin-hinge-sum (partial sums, mean in wrapper).

    margin_ref:  SMEM (1,)         f32
    logits_ref:  VMEM (bt, C)      native dtype (f32 or bf16)
    targets_ref: VMEM (bt, 1)      i32
    out_ref:     VMEM (1, 8, 128)  f32 -- [0,0,0]=ce_sum, [0,1,0]=margin_sum
    """
    bt = logits_ref.shape[0]
    tgt = targets_ref[...]  # (bt, 1) i32

    if n_full == 1 and c_tail == 0:
        # Single pass over the whole class axis (common classification case).
        t_acc, o_acc, m_acc, s_acc = _chunk_stats(logits_ref[...], 0, tgt, True)
    else:
        # Online (chunked) softmax: running max / sum-exp / target / other-max.
        def step(start, size, carry):
            t_acc, o_acc, m_acc, s_acc = carry
            ts, om, cm, cs = _chunk_stats(
                logits_ref[:, pl.ds(start, size)], start, tgt, False)
            m_new = jnp.maximum(m_acc, cm)
            s_new = s_acc * jnp.exp(m_acc - m_new) + cs * jnp.exp(cm - m_new)
            return (t_acc + ts, jnp.maximum(o_acc, om), m_new, s_new)

        init = (jnp.zeros((bt, 1), jnp.float32),
                jnp.full((bt, 1), -jnp.inf, jnp.float32),
                jnp.full((bt, 1), -jnp.inf, jnp.float32),
                jnp.zeros((bt, 1), jnp.float32))
        carry = lax.fori_loop(
            0, n_full,
            lambda j, c: step(pl.multiple_of(j * c_chunk, 128), c_chunk, c),
            init)
        if c_tail:
            carry = step(n_full * c_chunk, c_tail, carry)
        t_acc, o_acc, m_acc, s_acc = carry

    margin = margin_ref[0]
    # Mask rows past the true batch size (partial final block reads undefined
    # data); jnp.where (not multiply) so NaN/Inf garbage cannot leak through.
    row = lax.broadcasted_iota(jnp.int32, (bt, 1), 0) + pl.program_id(0) * bt
    row_valid = row < batch_size

    # Cross entropy: lse - target_logit.
    lse = jnp.log(s_acc) + m_acc
    ce_rows = lse - t_acc
    # Margin hinge; PyTorch zeroes the target slot before the max, so the
    # "other max" is clamped at 0.0 -- keep that quirk.
    mg_rows = jnp.maximum(jnp.maximum(o_acc, 0.0) - t_acc + margin, 0.0)

    ce_sum = jnp.sum(jnp.where(row_valid, ce_rows, 0.0))
    mg_sum = jnp.sum(jnp.where(row_valid, mg_rows, 0.0))

    # Lane-dense per-tile partials: sublane 0 = ce_sum, sublane 1 = margin_sum.
    sub = lax.broadcasted_iota(jnp.int32, (8, 128), 0)
    out_ref[...] = jnp.where(sub == 0, ce_sum,
                             jnp.where(sub == 1, mg_sum, 0.0))[None, :, :]


@jax.jit
def _pmd_loss_call(logits, targets_2d, margin_arr):
    b, c = logits.shape
    b_tile, c_chunk, n_full, c_tail, vmem_limit = _plan_tiles(
        b, c, jnp.dtype(logits.dtype).itemsize)
    num_tiles = pl.cdiv(b, b_tile)

    kernel = functools.partial(
        _pmd_loss_kernel, batch_size=b, c_chunk=c_chunk,
        n_full=n_full, c_tail=c_tail)

    out = pl.pallas_call(
        kernel,
        out_shape=jax.ShapeDtypeStruct((num_tiles, 8, 128), jnp.float32),
        grid=(num_tiles,),
        in_specs=[
            pl.BlockSpec(memory_space=pltpu.MemorySpace.SMEM),   # margin scalar
            pl.BlockSpec((b_tile, c), lambda i: (i, 0)),         # logits tile (native dtype)
            pl.BlockSpec((b_tile, 1), lambda i: (i, 0)),         # targets tile
        ],
        out_specs=pl.BlockSpec((1, 8, 128), lambda i: (i, 0, 0)),
        compiler_params=pltpu.CompilerParams(
            dimension_semantics=("parallel",),   # shard batch tiles across TCs (v7x)
            vmem_limit_bytes=vmem_limit,
        ),
    )(margin_arr, logits, targets_2d)

    ce_sum = jnp.sum(out[:, 0, 0])
    mg_sum = jnp.sum(out[:, 1, 0])
    return (ce_sum + mg_sum) / jnp.float32(b)


class ProgressiveMarginDecayingLoss:
    """JAX/Pallas port of the PyTorch ProgressiveMarginDecayingLoss module."""

    def __init__(self, margin_init=0.5, margin_final=0.1, num_epochs=30):
        self.margin_init = margin_init
        self.margin_final = margin_final
        self.num_epochs = num_epochs
        self.current_margin = margin_init
        self.current_epoch = 0

    def update_margin(self):
        self.current_epoch += 1
        progress = min(self.current_epoch / self.num_epochs, 1.0)
        self.current_margin = self.margin_init - progress * (
            self.margin_init - self.margin_final)

    def __call__(self, logits, targets):
        b = logits.shape[0]
        targets_2d = targets.astype(jnp.int32).reshape(b, 1)
        margin_arr = jnp.array([self.current_margin], dtype=jnp.float32)
        # TODO(synk): for tiny C (<128) pack 128//C batch rows into the lane axis
        # (segment-wise lane reductions) to raise vreg lane utilization ~8x.
        # TODO(synk): if even an 8-row tile x C overflows VMEM (extreme vocab),
        # add a second ("arbitrary") class grid axis with VMEM-scratch accumulators.
        return _pmd_loss_call(logits, targets_2d, margin_arr)


def _reference(logits, targets, margin):
    """Pure-JAX reference mirroring the PyTorch forward."""
    logits = logits.astype(jnp.float32)
    bsz, c = logits.shape
    log_probs = jax.nn.log_softmax(logits, axis=1)
    ce = -jnp.mean(log_probs[jnp.arange(bsz), targets])
    mask = jax.nn.one_hot(targets, c, dtype=jnp.float32)
    tgt_logits = jnp.sum(logits * mask, axis=1)
    other_max = jnp.max(logits * (1.0 - mask), axis=1)
    margin_loss = jnp.mean(jnp.maximum(other_max - tgt_logits + margin, 0.0))
    return ce + margin_loss


if __name__ == "__main__":
    key = jax.random.PRNGKey(0)
    k1, k2, k3, k4, k5, k6 = jax.random.split(key, 6)

    # Case 1: f32 logits, small C (single-chunk path), margin decay path.
    B, C = 8, 16
    logits = jax.random.normal(k1, (B, C), dtype=jnp.float32)
    targets = jax.random.randint(k2, (B,), 0, C, dtype=jnp.int32)
    loss_mod = ProgressiveMarginDecayingLoss(margin_init=0.5, margin_final=0.1,
                                             num_epochs=30)
    t1 = jax.block_until_ready(loss_mod(logits, targets))
    loss_mod.update_margin()
    t2 = jax.block_until_ready(loss_mod(logits, targets))
    r1 = _reference(logits, targets, 0.5)
    r2 = _reference(logits, targets, loss_mod.current_margin)
    assert jnp.allclose(t1, r1, atol=1e-5, rtol=1e-5), (t1, r1)
    assert jnp.allclose(t2, r2, atol=1e-5, rtol=1e-5), (t2, r2)

    # Case 2: bf16 logits + B not a multiple of 8 (partial final block masking,
    # native-dtype path).
    B2, C2 = 6, 16
    lg2 = jax.random.normal(k3, (B2, C2), dtype=jnp.float32).astype(jnp.bfloat16)
    tg2 = jax.random.randint(k4, (B2,), 0, C2, dtype=jnp.int32)
    mod2 = ProgressiveMarginDecayingLoss()
    t3 = jax.block_until_ready(mod2(lg2, tg2))
    r3 = _reference(lg2, tg2, 0.5)
    assert jnp.allclose(t3, r3, atol=1e-4, rtol=1e-4), (t3, r3)

    # Case 3: chunked online-softmax path (C > single-chunk threshold):
    # 1280 = 2 full 512-lane chunks + a 256-lane tail; B not a multiple of 8.
    B3, C3 = 13, 1280
    lg3 = jax.random.normal(k5, (B3, C3), dtype=jnp.float32)
    tg3 = jax.random.randint(k6, (B3,), 0, C3, dtype=jnp.int32)
    mod3 = ProgressiveMarginDecayingLoss()
    t4 = jax.block_until_ready(mod3(lg3, tg3))
    r4 = _reference(lg3, tg3, 0.5)
    assert jnp.allclose(t4, r4, atol=1e-4, rtol=1e-4), (t4, r4)

    print("KERNEL_OK")
</pallas_src>

<mosaic_0001>
module attributes {stable_mosaic.version = 11 : i64} {
  func.func @_pmd_loss_kernel(%arg0: i32, %arg1: memref<1xf32, #tpu.memory_space<smem>>, %arg2: memref<8x16xf32, #tpu.memory_space<vmem>>, %arg3: memref<8x1xi32, #tpu.memory_space<vmem>>, %arg4: memref<1x8x128xf32, #tpu.memory_space<vmem>>) attributes {dimension_semantics = [#tpu.dimension_semantics<parallel>], iteration_bounds = array<i64: 1>, scalar_prefetch = 0 : i64, scratch_operands = 0 : i64, tpu.core_type = #tpu.core_type<tc>, window_params = [{transform_indices = @transform_0, window_bounds = array<i64: 1>}, {transform_indices = @transform_1, window_bounds = array<i64: 8, 16>}, {transform_indices = @transform_2, window_bounds = array<i64: 8, 1>}, {transform_indices = @transform_3, window_bounds = array<i64: 1, 8, 128>}]} {
    %c0 = arith.constant 0 : index
    %c0_0 = arith.constant 0 : index
    %0 = vector.load %arg3[%c0, %c0_0] : memref<8x1xi32, #tpu.memory_space<vmem>>, vector<8x1xi32>
    %c0_1 = arith.constant 0 : index
    %c0_2 = arith.constant 0 : index
    %1 = vector.load %arg2[%c0_1, %c0_2] : memref<8x16xf32, #tpu.memory_space<vmem>>, vector<8x16xf32>
    %2 = tpu.iota {dimensions = array<i32: 1>} : vector<8x16xi32>
    %c0_i32 = arith.constant 0 : i32
    %3 = vector.broadcast %c0_i32 : i32 to vector<8x16xi32>
    %4 = arith.addi %2, %3 : vector<8x16xi32>
    %5 = vector.broadcast %0 : vector<8x1xi32> to vector<8x16xi32>
    %6 = arith.cmpi eq, %4, %5 : vector<8x16xi32>
    %cst = arith.constant 0.000000e+00 : f32
    %7 = vector.broadcast %cst : f32 to vector<8x16xf32>
    %8 = arith.select %6, %1, %7 : vector<8x16xi1>, vector<8x16xf32>
    %cst_3 = arith.constant dense<0.000000e+00> : vector<8xf32>
    %9 = vector.multi_reduction <add>, %8, %cst_3 [1] : vector<8x16xf32> to vector<8xf32>
    %10 = vector.shape_cast %9 : vector<8xf32> to vector<8x1xf32>
    %cst_4 = arith.constant 0xFF800000 : f32
    %11 = vector.broadcast %cst_4 : f32 to vector<8x16xf32>
    %12 = arith.select %6, %11, %1 : vector<8x16xi1>, vector<8x16xf32>
    %cst_5 = arith.constant dense<0xFF800000> : vector<8xf32>
    %13 = vector.multi_reduction <maximumf>, %12, %cst_5 [1] : vector<8x16xf32> to vector<8xf32>
    %14 = vector.shape_cast %13 : vector<8xf32> to vector<8x1xf32>
    %15 = arith.maximumf %14, %10 : vector<8x1xf32>
    %16 = vector.broadcast %15 : vector<8x1xf32> to vector<8x16xf32>
    %17 = arith.subf %1, %16 : vector<8x16xf32>
    %18 = math.exp %17 : vector<8x16xf32>
    %cst_6 = arith.constant dense<0.000000e+00> : vector<8xf32>
    %19 = vector.multi_reduction <add>, %18, %cst_6 [1] : vector<8x16xf32> to vector<8xf32>
    %20 = vector.shape_cast %19 : vector<8xf32> to vector<8x1xf32>
    %c0_7 = arith.constant 0 : index
    %21 = memref.load %arg1[%c0_7] : memref<1xf32, #tpu.memory_space<smem>>
    %22 = tpu.iota {dimensions = array<i32: 0>} : vector<8x1xi32>
    %c8_i32 = arith.constant 8 : i32
    %23 = arith.muli %arg0, %c8_i32 : i32
    %24 = vector.broadcast %23 : i32 to vector<8x1xi32>
    %25 = arith.addi %22, %24 : vector<8x1xi32>
    %c8_i32_8 = arith.constant 8 : i32
    %26 = vector.broadcast %c8_i32_8 : i32 to vector<8x1xi32>
    %27 = arith.cmpi slt, %25, %26 : vector<8x1xi32>
    %28 = math.log %20 : vector<8x1xf32>
    %29 = arith.addf %28, %15 : vector<8x1xf32>
    %30 = arith.subf %29, %10 : vector<8x1xf32>
    %cst_9 = arith.constant 0.000000e+00 : f32
    %31 = vector.broadcast %cst_9 : f32 to vector<8x1xf32>
    %32 = arith.maximumf %14, %31 : vector<8x1xf32>
    %33 = arith.subf %32, %10 : vector<8x1xf32>
    %34 = vector.broadcast %21 : f32 to vector<8x1xf32>
    %35 = arith.addf %33, %34 : vector<8x1xf32>
    %cst_10 = arith.constant 0.000000e+00 : f32
    %36 = vector.broadcast %cst_10 : f32 to vector<8x1xf32>
    %37 = arith.maximumf %35, %36 : vector<8x1xf32>
    %cst_11 = arith.constant 0.000000e+00 : f32
    %38 = vector.broadcast %cst_11 : f32 to vector<8x1xf32>
    %39 = arith.select %27, %30, %38 : vector<8x1xi1>, vector<8x1xf32>
    %40 = vector.shape_cast %39 : vector<8x1xf32> to vector<1x8x1xf32>
    %cst_12 = arith.constant dense<0.000000e+00> : vector<1xf32>
    %41 = vector.multi_reduction <add>, %40, %cst_12 [1, 2] : vector<1x8x1xf32> to vector<1xf32>
    %42 = vector.shape_cast %41 : vector<1xf32> to vector<1x1x1xf32>
    %43 = vector.extract %42[0, 0, 0] : f32 from vector<1x1x1xf32>
    %cst_13 = arith.constant 0.000000e+00 : f32
    %44 = vector.broadcast %cst_13 : f32 to vector<8x1xf32>
    %45 = arith.select %27, %37, %44 : vector<8x1xi1>, vector<8x1xf32>
    %46 = vector.shape_cast %45 : vector<8x1xf32> to vector<1x8x1xf32>
    %cst_14 = arith.constant dense<0.000000e+00> : vector<1xf32>
    %47 = vector.multi_reduction <add>, %46, %cst_14 [1, 2] : vector<1x8x1xf32> to vector<1xf32>
    %48 = vector.shape_cast %47 : vector<1xf32> to vector<1x1x1xf32>
    %49 = vector.extract %48[0, 0, 0] : f32 from vector<1x1x1xf32>
    %50 = tpu.iota {dimensions = array<i32: 0>} : vector<8x128xi32>
    %c0_i32_15 = arith.constant 0 : i32
    %51 = vector.broadcast %c0_i32_15 : i32 to vector<8x128xi32>
    %52 = arith.cmpi eq, %50, %51 : vector<8x128xi32>
    %c1_i32 = arith.constant 1 : i32
    %53 = vector.broadcast %c1_i32 : i32 to vector<8x128xi32>
    %54 = arith.cmpi eq, %50, %53 : vector<8x128xi32>
    %cst_16 = arith.constant 0.000000e+00 : f32
    %55 = vector.broadcast %49 : f32 to vector<8x128xf32>
    %56 = vector.broadcast %cst_16 : f32 to vector<8x128xf32>
    %57 = arith.select %54, %55, %56 : vector<8x128xi1>, vector<8x128xf32>
    %58 = vector.broadcast %43 : f32 to vector<8x128xf32>
    %59 = arith.select %52, %58, %57 : vector<8x128xi1>, vector<8x128xf32>
    %60 = vector.shape_cast %59 : vector<8x128xf32> to vector<1x8x128xf32>
    %c0_17 = arith.constant 0 : index
    %c0_18 = arith.constant 0 : index
    %c0_19 = arith.constant 0 : index
    %61 = vector.load %arg4[%c0_17, %c0_18, %c0_19] : memref<1x8x128xf32, #tpu.memory_space<vmem>>, vector<1x8x128xf32>
    tpu.vector_store %arg4[%c0_17, %c0_18, %c0_19], %60 {strides = array<i32>} : memref<1x8x128xf32, #tpu.memory_space<vmem>>, vector<1x8x128xf32>,
    return
  }
  func.func @transform_0(%arg0: i32) -> i32 {
    %c0_i32 = arith.constant 0 : i32
    %c0_i32_0 = arith.constant 0 : i32
    return %c0_i32 : i32
  }
  func.func @transform_1(%arg0: i32) -> (i32, i32) {
    %c0_i32 = arith.constant 0 : i32
    %c0_i32_0 = arith.constant 0 : i32
    return %arg0, %c0_i32 : i32, i32
  }
  func.func @transform_2(%arg0: i32) -> (i32, i32) {
    %c0_i32 = arith.constant 0 : i32
    %c0_i32_0 = arith.constant 0 : i32
    return %arg0, %c0_i32 : i32, i32
  }
  func.func @transform_3(%arg0: i32) -> (i32, i32, i32) {
    %c0_i32 = arith.constant 0 : i32
    %c0_i32_0 = arith.constant 0 : i32
    %c0_i32_1 = arith.constant 0 : i32
    return %arg0, %c0_i32, %c0_i32_0 : i32, i32, i32
  }
}

</mosaic_0001>

<llo_original>
// kernel: _pmd_loss_call.1
$region0: #{_pmd_loss_call.1}
  #allocation0 [shape = 'u32[]', space=smem, size = 0x4, offset = 0x4, fixed_abs, tag = 'smem constant byte address 0x4 - core index']
  #allocation1 [shape = 'u32[144,128]{1,0:T(1,128)}', space=vmem, size = 0x12000, scoped, tag = 'internal scratch']
  #allocation2 [shape = 'f32[1]{0:T(128)S(6)}', space=smem, size = 0x200, scoped, tag = 'scoped memory for _pmd_loss_call.1']
  %s0 = inlined_call_operand.<no memory space> [shape: f32[1], index: 0, kind: input, shape index: {}]
  %s1 = inlined_call_operand.vmem [shape: f32[8,16], index: 1, kind: input, shape index: {}]
  %s2 = inlined_call_operand.vmem [shape: s32[8,1], index: 2, kind: input, shape index: {}]
  %s3 = inlined_call_operand.vmem [shape: f32[1,8,128], index: 3, kind: output, shape index: {}]
  %s4 = sld [smem:[#allocation0]]
  $region22: #{_pmd_loss_call.1} parent=0
    _
  %s6 = ssub.s32 1, %s4
  %s7 = scalar_select 0, %s6, %s4
  %8 = sst [smem:[#allocation2]] %s0
  // Predicated region
  $region2: #{_pmd_loss_call.1} parent=0 // pred_check
    _
  $region3: #{_pmd_loss_call.1} parent=0 // pred_check_branch
    %10 = sbr.rel (0) target = $region5
  $region4: #{_pmd_loss_call.1} parent=0 // pred_region
    _
  $region5: #{_pmd_loss_call.1} parent=0 // pred_fallthru
    _
  // Predicated region
  $region6: #{_pmd_loss_call.1} parent=0 // pred_check
    _
  $region7: #{_pmd_loss_call.1} parent=0 // pred_check_branch
    %12 = sbr.rel (0) target = $region9
  $region8: #{_pmd_loss_call.1} parent=0 // pred_region
    _
  $region9: #{_pmd_loss_call.1} parent=0 // pred_fallthru
    _
  // Predicated region
  $region10: #{_pmd_loss_call.1} parent=0 // pred_check
    _
  $region11: #{_pmd_loss_call.1} parent=0 // pred_check_branch
    %14 = sbr.rel (0) target = $region13
  $region12: #{_pmd_loss_call.1} parent=0 // pred_region
    _
  $region13: #{_pmd_loss_call.1} parent=0 // pred_fallthru
    _
  %v15 = vld [vmem:[%s2] sm:$0xff]
  %v16 = vld [vmem:[%s1] sm:$0xff]
  %v17 = vlaneseq
  %v18 = vand.u32 %v17, 127
  %19 = vset.pattern.permute.xlu0 0
  %20 = vperm.xlu0 %19, %v15
  %v21 = vpop.permute.xlu0 %20
  %vm22 = vcmp.eq.s32.totalorder %v18, %v21
  %v23 = vsel %vm22, %v16, 0.0
  %vm24 = vcmask 130048
  %v25 = vsel %vm24, %v23, 0.0
  %26 = vadd.xlane.f32.xlu0 %v25
  %v27 = vpop.xlane.xlu0 %26
  %v28 = vsel %vm22, -inf, %v16
  %v29 = vsel %vm24, %v28, -inf
  %30 = vmax.xlane.f32.xlu0 %v29
  %v31 = vpop.xlane.xlu0 %30
  %v32 = vmax.f32 %v31, %v27
  %v33 = vsub.f32 %v16, %v32
  %v34 = vmul.f32 %v33, 1.442695
  %v35 = vpow.pop %v34
  %v36 = vsel %vm24, %v35, 0.0
  %37 = vadd.xlane.f32.xlu0 %v36
  %v38 = vpop.xlane.xlu0 %37
  %s39 = sld [smem:[#allocation2]]
  %v40 = vlaneseq
  %v41 = vshrl.u32 %v40, 7
  %s42 = smul.u32 0, 8
  %v43 = vstv %s42
  %v44 = vadd.s32 %v41, %v43
  %vm45 = vcmp.lt.s32.totalorder %v44, 8
  %v46 = vlog2.pop %v38
  %v47 = vmul.f32 %v46, 0.6931472
  %v48 = vadd.f32 %v47, %v32
  %v49 = vsub.f32 %v48, %v27
  %v50 = vmax.f32 %v31, 0.0
  %v51 = vsub.f32 %v50, %v27
  %v52 = vstv %s39
  %v53 = vadd.f32 %v51, %v52
  %v54 = vmax.f32 %v53, 0.0
  %v55 = vsel %vm45, %v49, 0.0
  %vm56 = vcmask 7168
  %v57 = vsel %vm56, %v55, 0.0
  %58 = vadd.xlane.f32.xlu0 %v57
  %v59 = vpop.xlane.xlu0 %58
  %v60 = vrot.slane %v59, 4
  %v61 = vadd.f32 %v59, %v60
  %v62 = vrot.slane %v61, 2
  %v63 = vadd.f32 %v61, %v62
  %v64 = vrot.slane %v63, 1
  %v65 = vadd.f32 %v63, %v64
  %s66 = vtos %v65
  %v67 = vsel %vm45, %v54, 0.0
  %v68 = vsel %vm56, %v67, 0.0
  %69 = vadd.xlane.f32.xlu0 %v68
  %v70 = vpop.xlane.xlu0 %69
  %v71 = vrot.slane %v70, 4
  %v72 = vadd.f32 %v70, %v71
  %v73 = vrot.slane %v72, 2
  %v74 = vadd.f32 %v72, %v73
  %v75 = vrot.slane %v74, 1
  %v76 = vadd.f32 %v74, %v75
  %s77 = vtos %v76
  %vm78 = vcmp.eq.s32.totalorder %v41, 0
  %vm79 = vcmp.eq.s32.totalorder %v41, 1
  %v80 = vstv %s77
  %v81 = vsel %vm79, %v80, 0.0
  %v82 = vstv %s66
  %v83 = vsel %vm78, %v82, %v81
  %84 = vst [vmem:[%s3] sm:$0xff] %v83
  // Predicated region
  $region14: #{_pmd_loss_call.1} parent=0 // pred_check
    _
  $region15: #{_pmd_loss_call.1} parent=0 // pred_check_branch
    %86 = sbr.rel (0) target = $region17
  $region16: #{_pmd_loss_call.1} parent=0 // pred_region
    _
  $region17: #{_pmd_loss_call.1} parent=0 // pred_fallthru
    _
  // Predicated region
  $region18: #{_pmd_loss_call.1} parent=0 // pred_check
    _
  $region19: #{_pmd_loss_call.1} parent=0 // pred_check_branch
    %88 = sbr.rel (0) target = $region21
  $region20: #{_pmd_loss_call.1} parent=0 // pred_region
    _
  $region21: #{_pmd_loss_call.1} parent=0 // pred_fallthru
    _

</llo_original>
